<compile_context>
chip_gen: v6e
topology: v6e:2x2x1
jax: 0.10.0
libtpu: 0.0.40
codegen_flags: <defaults>
</compile_context>

<pallas_src>
import functools

import jax
import jax.numpy as jnp
from jax.experimental import pallas as pl
from jax.experimental.pallas import tpu as pltpu


def _round_up(n: int, m: int) -> int:
    return ((n + m - 1) // m) * m


def critic_kernel(x_ref, w1_ref, w2_ref, w3_ref, c_ref, out_ref, *,
                  n_h, n_h2, off_b1, off_b2, off_b3, off_b4, off_w4):
    """Whole 4-layer MLP for one batch tile, feature-major in VMEM."""
    x = x_ref[...]                                   # (bt, d_in) f32

    # Column constants, sliced from the packed (rows, 1) buffer (static,
    # sublane-aligned offsets).
    b1 = c_ref[pl.ds(off_b1, n_h), :]                # (h, 1)
    b2 = c_ref[pl.ds(off_b2, n_h), :]                # (h, 1)
    b3 = c_ref[pl.ds(off_b3, n_h2), :]               # (2h, 1)
    b4 = c_ref[pl.ds(off_b4, 1), :]                  # (1, 1)
    w4 = c_ref[pl.ds(off_w4, n_h2), :]               # (2h, 1)

    # fc1: contract the feature axes of W1 (h, d) and x (bt, d) -> (h, bt).
    h = jax.lax.dot_general(
        w1_ref[...], x, (((1,), (1,)), ((), ())),
        preferred_element_type=jnp.float32)
    h = jnp.maximum(h + b1, 0.0)                     # (h, bt)

    # fc2: (h, h) @ (h, bt) -> (h, bt)
    h = jnp.dot(w2_ref[...], h, preferred_element_type=jnp.float32)
    h = jnp.maximum(h + b2, 0.0)

    # fc3: (2h, h) @ (h, bt) -> (2h, bt)
    h = jnp.dot(w3_ref[...], h, preferred_element_type=jnp.float32)
    h = jnp.maximum(h + b3, 0.0)

    # fc4 (out_features == 1): VPU multiply + sublane reduce, lane-dense store.
    out_ref[...] = jnp.sum(h * w4, axis=0, keepdims=True) + b4   # (1, bt)


def critic_forward(x, params, *, batch_tile=None):
    """x: (B, input_dim) f32.  params: torch-layout weights (out, in), biases (out,).

    Returns (B, 1) f32 values.
    """
    B, d_in = x.shape
    n_h = params["w1"].shape[0]          # hidden_dim
    n_h2 = params["w3"].shape[0]         # hidden_dim * 2

    # ---- grid / tile choice ----
    if batch_tile is None:
        CAP = 8192                       # per-step working set ~8 MiB at this cap
        if B <= CAP:
            batch_tile = max(128, _round_up(B, 128))     # single grid step
            num_tiles = 1
        else:
            num_tiles = pl.cdiv(B, CAP)
            if num_tiles % 2:            # even grid -> v7x megacore load balance
                num_tiles += 1
            batch_tile = _round_up(pl.cdiv(B, num_tiles), 128)
    else:
        batch_tile = _round_up(batch_tile, 128)
        num_tiles = pl.cdiv(B, batch_tile)

    B_pad = batch_tile * num_tiles
    if B_pad != B:
        x = jnp.pad(x, ((0, B_pad - B), (0, 0)))

    w1, w2, w3 = params["w1"], params["w2"], params["w3"]

    # ---- pack all (out, 1)-shaped constants into one sublane-aligned buffer ----
    cols = [params["b1"].reshape(-1, 1),
            params["b2"].reshape(-1, 1),
            params["b3"].reshape(-1, 1),
            params["b4"].reshape(-1, 1),
            params["w4"].reshape(-1, 1)]          # (1, 2h) -> (2h, 1) column
    segs, offs, off = [], [], 0
    for c in cols:
        offs.append(off)
        rows = c.shape[0]
        rows_p = _round_up(rows, 8)
        segs.append(jnp.pad(c, ((0, rows_p - rows), (0, 0))) if rows_p != rows else c)
        off += rows_p
    cpack = jnp.concatenate(segs, axis=0)         # (off, 1)

    def full2(a):
        return pl.BlockSpec(a.shape, lambda i: (0, 0))

    kernel = functools.partial(
        critic_kernel, n_h=n_h, n_h2=n_h2,
        off_b1=offs[0], off_b2=offs[1], off_b3=offs[2],
        off_b4=offs[3], off_w4=offs[4])

    out = pl.pallas_call(
        kernel,
        out_shape=jax.ShapeDtypeStruct((1, B_pad), jnp.float32),
        grid=(num_tiles,),
        in_specs=[
            pl.BlockSpec((batch_tile, d_in), lambda i: (i, 0)),   # x tile
            full2(w1), full2(w2), full2(w3), full2(cpack),
        ],
        # Lane-dense output: each step writes a (1, batch_tile) column slab.
        out_specs=pl.BlockSpec((1, batch_tile), lambda i: (0, i)),
        compiler_params=pltpu.CompilerParams(
            dimension_semantics=("parallel",)),
    )(x, w1, w2, w3, cpack)

    return out.reshape(B_pad, 1)[:B]


def init_critic_params(key, input_dim, hidden_dim):
    """torch.nn.Linear-style layout ((out, in) weights, (out,) biases) and init."""
    dims = [(hidden_dim, input_dim),
            (hidden_dim, hidden_dim),
            (hidden_dim * 2, hidden_dim),
            (1, hidden_dim * 2)]
    params = {}
    for idx, (fan_out, fan_in) in enumerate(dims, start=1):
        key, kw, kb = jax.random.split(key, 3)
        bound = 1.0 / (fan_in ** 0.5)
        params[f"w{idx}"] = jax.random.uniform(
            kw, (fan_out, fan_in), dtype=jnp.float32, minval=-bound, maxval=bound)
        params[f"b{idx}"] = jax.random.uniform(
            kb, (fan_out,), dtype=jnp.float32, minval=-bound, maxval=bound)
    return params


def critic_reference(x, params):
    dot = functools.partial(jnp.dot, precision=jax.lax.Precision.HIGHEST)
    h = jnp.maximum(dot(x, params["w1"].T) + params["b1"], 0.0)
    h = jnp.maximum(dot(h, params["w2"].T) + params["b2"], 0.0)
    h = jnp.maximum(dot(h, params["w3"].T) + params["b3"], 0.0)
    return dot(h, params["w4"].T) + params["b4"]


if __name__ == "__main__":
    key = jax.random.PRNGKey(0)
    key, kx = jax.random.split(key)

    # Small shapes consistent with the module: batch=64, input_dim=16, hidden=32.
    batch, input_dim, hidden_dim = 64, 16, 32

    x = jax.random.normal(kx, (batch, input_dim), jnp.float32)
    params = init_critic_params(key, input_dim, hidden_dim)

    value = jax.block_until_ready(critic_forward(x, params))
    ref = critic_reference(x, params)
    assert value.shape == (batch, 1)
    assert jnp.allclose(value, ref, atol=1e-4, rtol=1e-4)

    # Non-aligned batch with an explicit small tile to exercise the padding
    # path and a multi-step (even) grid on the "parallel" batch axis.
    x2 = jax.random.normal(jax.random.PRNGKey(1), (1000, input_dim), jnp.float32)
    v2 = jax.block_until_ready(critic_forward(x2, params, batch_tile=256))
    assert v2.shape == (1000, 1)
    assert jnp.allclose(v2, critic_reference(x2, params), atol=1e-4, rtol=1e-4)

    print("KERNEL_OK")
</pallas_src>

<mosaic_0001>
module attributes {stable_mosaic.version = 11 : i64} {
  func.func @critic_kernel(%arg0: i32, %arg1: memref<128x16xf32, #tpu.memory_space<vmem>>, %arg2: memref<32x16xf32, #tpu.memory_space<vmem>>, %arg3: memref<32x32xf32, #tpu.memory_space<vmem>>, %arg4: memref<64x32xf32, #tpu.memory_space<vmem>>, %arg5: memref<200x1xf32, #tpu.memory_space<vmem>>, %arg6: memref<1x128xf32, #tpu.memory_space<vmem>>) attributes {dimension_semantics = [#tpu.dimension_semantics<parallel>], iteration_bounds = array<i64: 1>, scalar_prefetch = 0 : i64, scratch_operands = 0 : i64, tpu.core_type = #tpu.core_type<tc>, window_params = [{transform_indices = @transform_0, window_bounds = array<i64: 128, 16>}, {pipeline_mode = #tpu.pipeline_mode<synchronous>, transform_indices = @transform_1, window_bounds = array<i64: 32, 16>}, {pipeline_mode = #tpu.pipeline_mode<synchronous>, transform_indices = @transform_2, window_bounds = array<i64: 32, 32>}, {pipeline_mode = #tpu.pipeline_mode<synchronous>, transform_indices = @transform_3, window_bounds = array<i64: 64, 32>}, {pipeline_mode = #tpu.pipeline_mode<synchronous>, transform_indices = @transform_4, window_bounds = array<i64: 200, 1>}, {transform_indices = @transform_5, window_bounds = array<i64: 1, 128>}]} {
    %c0 = arith.constant 0 : index
    %c0_0 = arith.constant 0 : index
    %0 = vector.load %arg1[%c0, %c0_0] : memref<128x16xf32, #tpu.memory_space<vmem>>, vector<128x16xf32>
    %c0_1 = arith.constant 0 : index
    %c0_2 = arith.constant 0 : index
    %1 = vector.load %arg5[%c0_1, %c0_2] : memref<200x1xf32, #tpu.memory_space<vmem>>, vector<32x1xf32>
    %c32 = arith.constant 32 : index
    %c0_3 = arith.constant 0 : index
    %2 = vector.load %arg5[%c32, %c0_3] : memref<200x1xf32, #tpu.memory_space<vmem>>, vector<32x1xf32>
    %c64 = arith.constant 64 : index
    %c0_4 = arith.constant 0 : index
    %3 = vector.load %arg5[%c64, %c0_4] : memref<200x1xf32, #tpu.memory_space<vmem>>, vector<64x1xf32>
    %c128 = arith.constant 128 : index
    %c0_5 = arith.constant 0 : index
    %4 = vector.load %arg5[%c128, %c0_5] : memref<200x1xf32, #tpu.memory_space<vmem>>, vector<1x1xf32>
    %c136 = arith.constant 136 : index
    %c0_6 = arith.constant 0 : index
    %5 = vector.load %arg5[%c136, %c0_6] : memref<200x1xf32, #tpu.memory_space<vmem>>, vector<64x1xf32>
    %c0_7 = arith.constant 0 : index
    %c0_8 = arith.constant 0 : index
    %6 = vector.load %arg2[%c0_7, %c0_8] : memref<32x16xf32, #tpu.memory_space<vmem>>, vector<32x16xf32>
    %cst = arith.constant dense<0.000000e+00> : vector<32x128xf32>
    %7 = tpu.matmul %6, %0, %cst {dimension_numbers = #tpu.dot_dimension_numbers<[1], [1], [0], [0], [0, 0, 1, 0], [], []>} : vector<32x16xf32>, vector<128x16xf32>, vector<32x128xf32> -> vector<32x128xf32>
    %8 = vector.broadcast %1 : vector<32x1xf32> to vector<32x128xf32>
    %9 = arith.addf %7, %8 : vector<32x128xf32>
    %cst_9 = arith.constant 0.000000e+00 : f32
    %10 = vector.broadcast %cst_9 : f32 to vector<32x128xf32>
    %11 = arith.maximumf %9, %10 : vector<32x128xf32>
    %c0_10 = arith.constant 0 : index
    %c0_11 = arith.constant 0 : index
    %12 = vector.load %arg3[%c0_10, %c0_11] : memref<32x32xf32, #tpu.memory_space<vmem>>, vector<32x32xf32>
    %cst_12 = arith.constant dense<0.000000e+00> : vector<32x128xf32>
    %13 = tpu.matmul %12, %11, %cst_12 {dimension_numbers = #tpu.dot_dimension_numbers<[1], [0], [0], [1], [0, 0, 1, 1], [], []>} : vector<32x32xf32>, vector<32x128xf32>, vector<32x128xf32> -> vector<32x128xf32>
    %14 = vector.broadcast %2 : vector<32x1xf32> to vector<32x128xf32>
    %15 = arith.addf %13, %14 : vector<32x128xf32>
    %cst_13 = arith.constant 0.000000e+00 : f32
    %16 = vector.broadcast %cst_13 : f32 to vector<32x128xf32>
    %17 = arith.maximumf %15, %16 : vector<32x128xf32>
    %c0_14 = arith.constant 0 : index
    %c0_15 = arith.constant 0 : index
    %18 = vector.load %arg4[%c0_14, %c0_15] : memref<64x32xf32, #tpu.memory_space<vmem>>, vector<64x32xf32>
    %cst_16 = arith.constant dense<0.000000e+00> : vector<64x128xf32>
    %19 = tpu.matmul %18, %17, %cst_16 {dimension_numbers = #tpu.dot_dimension_numbers<[1], [0], [0], [1], [0, 0, 1, 1], [], []>} : vector<64x32xf32>, vector<32x128xf32>, vector<64x128xf32> -> vector<64x128xf32>
    %20 = vector.broadcast %3 : vector<64x1xf32> to vector<64x128xf32>
    %21 = arith.addf %19, %20 : vector<64x128xf32>
    %cst_17 = arith.constant 0.000000e+00 : f32
    %22 = vector.broadcast %cst_17 : f32 to vector<64x128xf32>
    %23 = arith.maximumf %21, %22 : vector<64x128xf32>
    %24 = vector.broadcast %5 : vector<64x1xf32> to vector<64x128xf32>
    %25 = arith.mulf %23, %24 : vector<64x128xf32>
    %cst_18 = arith.constant dense<0.000000e+00> : vector<128xf32>
    %26 = vector.multi_reduction <add>, %25, %cst_18 [0] : vector<64x128xf32> to vector<128xf32>
    %27 = vector.shape_cast %26 : vector<128xf32> to vector<1x128xf32>
    %28 = vector.broadcast %4 : vector<1x1xf32> to vector<1x128xf32>
    %29 = arith.addf %27, %28 : vector<1x128xf32>
    %c0_19 = arith.constant 0 : index
    %c0_20 = arith.constant 0 : index
    %30 = vector.load %arg6[%c0_19, %c0_20] : memref<1x128xf32, #tpu.memory_space<vmem>>, vector<1x128xf32>
    tpu.vector_store %arg6[%c0_19, %c0_20], %29 {strides = array<i32>} : memref<1x128xf32, #tpu.memory_space<vmem>>, vector<1x128xf32>,
    return
  }
  func.func @transform_0(%arg0: i32) -> (i32, i32) {
    %c0_i32 = arith.constant 0 : i32
    %c0_i32_0 = arith.constant 0 : i32
    return %arg0, %c0_i32 : i32, i32
  }
  func.func @transform_1(%arg0: i32) -> (i32, i32) {
    %c0_i32 = arith.constant 0 : i32
    %c0_i32_0 = arith.constant 0 : i32
    %c0_i32_1 = arith.constant 0 : i32
    return %c0_i32, %c0_i32_0 : i32, i32
  }
  func.func @transform_2(%arg0: i32) -> (i32, i32) {
    %c0_i32 = arith.constant 0 : i32
    %c0_i32_0 = arith.constant 0 : i32
    %c0_i32_1 = arith.constant 0 : i32
    return %c0_i32, %c0_i32_0 : i32, i32
  }
  func.func @transform_3(%arg0: i32) -> (i32, i32) {
    %c0_i32 = arith.constant 0 : i32
    %c0_i32_0 = arith.constant 0 : i32
    %c0_i32_1 = arith.constant 0 : i32
    return %c0_i32, %c0_i32_0 : i32, i32
  }
  func.func @transform_4(%arg0: i32) -> (i32, i32) {
    %c0_i32 = arith.constant 0 : i32
    %c0_i32_0 = arith.constant 0 : i32
    %c0_i32_1 = arith.constant 0 : i32
    return %c0_i32, %c0_i32_0 : i32, i32
  }
  func.func @transform_5(%arg0: i32) -> (i32, i32) {
    %c0_i32 = arith.constant 0 : i32
    %c0_i32_0 = arith.constant 0 : i32
    return %c0_i32, %arg0 : i32, i32
  }
}

</mosaic_0001>

<llo_original>
// kernel: tpu_custom_call.1
$region0: #{tpu_custom_call.1}
  #allocation0 [shape = 'u32[]', space=smem, size = 0x4, offset = 0x4, fixed_abs, tag = 'smem constant byte address 0x4 - core index']
  #allocation1 [shape = 'u32[144,128]{1,0:T(1,128)}', space=vmem, size = 0x12000, scoped, tag = 'internal scratch']
  %s0 = inlined_call_operand.vmem [shape: f32[128,16], index: 0, kind: input, shape index: {}]
  %s1 = inlined_call_operand.vmem [shape: f32[32,16], index: 1, kind: input, shape index: {}]
  %s2 = inlined_call_operand.vmem [shape: f32[32,32], index: 2, kind: input, shape index: {}]
  %s3 = inlined_call_operand.vmem [shape: f32[64,32], index: 3, kind: input, shape index: {}]
  %s4 = inlined_call_operand.vmem [shape: f32[200,1], index: 4, kind: input, shape index: {}]
  %s5 = inlined_call_operand.hbm [shape: f32[1,128], index: 5, kind: output, shape index: {}]
  %s6 = sld [smem:[#allocation0]]
  $region30: #{tpu_custom_call.1} parent=0
    _
  %s8 = ssub.s32 1, %s6
  %s9 = scalar_select 0, %s8, %s6
  $region1: #{tpu_custom_call.1} parent=0
    #allocation2 [shape = 'u8[512]{0}', space=vmem, size = 0x400, scoped, tag = 'output window, operand 0, single buffered']
    #allocation3 [shape = 's32[1]{0}', space=sflag, size = 0x4, scoped, tag = 'scoped memory for tpu_custom_call.1']
    %10 = vsyncpa [#allocation3], 0
    // Predicated region
    $region2: #{tpu_custom_call.1} parent=1 // pred_check
      _
    $region3: #{tpu_custom_call.1} parent=1 // pred_check_branch
      %12 = sbr.rel (0) target = $region5
    $region4: #{tpu_custom_call.1} parent=1 // pred_region
      _
    $region5: #{tpu_custom_call.1} parent=1 // pred_fallthru
      _
    // Predicated region
    $region6: #{tpu_custom_call.1} parent=1 // pred_check
      _
    $region7: #{tpu_custom_call.1} parent=1 // pred_check_branch
      %14 = sbr.rel (0) target = $region9
    $region8: #{tpu_custom_call.1} parent=1 // pred_region
      _
    $region9: #{tpu_custom_call.1} parent=1 // pred_fallthru
      _
    // Predicated region
    $region10: #{tpu_custom_call.1} parent=1 // pred_check
      _
    $region11: #{tpu_custom_call.1} parent=1 // pred_check_branch
      %16 = sbr.rel (0) target = $region13
    $region12: #{tpu_custom_call.1} parent=1 // pred_region
      _
    $region13: #{tpu_custom_call.1} parent=1 // pred_fallthru
      _
    // Predicated region
    $region14: #{tpu_custom_call.1} parent=1 // pred_check
      _
    $region15: #{tpu_custom_call.1} parent=1 // pred_check_branch
      %18 = sbr.rel (0) target = $region17
    $region16: #{tpu_custom_call.1} parent=1 // pred_region
      _
    $region17: #{tpu_custom_call.1} parent=1 // pred_fallthru
      _
    // Predicated region
    $region18: #{tpu_custom_call.1} parent=1 // pred_check
      _
    $region19: #{tpu_custom_call.1} parent=1 // pred_check_branch
      %20 = sbr.rel (0) target = $region21
    $region20: #{tpu_custom_call.1} parent=1 // pred_region
      _
    $region21: #{tpu_custom_call.1} parent=1 // pred_fallthru
      _
    %v21 = vld [vmem:[%s0] sm:$0xff]
    %v22 = vld [vmem:[%s0 + $0x8] sm:$0xff]
    %v23 = vld [vmem:[%s0 + $0x10] sm:$0xff]
    %v24 = vld [vmem:[%s0 + $0x18] sm:$0xff]
    %v25 = vld [vmem:[%s0 + $0x20] sm:$0xff]
    %v26 = vld [vmem:[%s0 + $0x28] sm:$0xff]
    %v27 = vld [vmem:[%s0 + $0x30] sm:$0xff]
    %v28 = vld [vmem:[%s0 + $0x38] sm:$0xff]
    %v29 = vld [vmem:[%s0 + $0x40] sm:$0xff]
    %v30 = vld [vmem:[%s0 + $0x48] sm:$0xff]
    %v31 = vld [vmem:[%s0 + $0x50] sm:$0xff]
    %v32 = vld [vmem:[%s0 + $0x58] sm:$0xff]
    %v33 = vld [vmem:[%s0 + $0x60] sm:$0xff]
    %v34 = vld [vmem:[%s0 + $0x68] sm:$0xff]
    %v35 = vld [vmem:[%s0 + $0x70] sm:$0xff]
    %v36 = vld [vmem:[%s0 + $0x78] sm:$0xff]
    %v37 = vld [vmem:[%s4] sm:$0xff]
    %v38 = vld [vmem:[%s4 + $0x8] sm:$0xff]
    %v39 = vld [vmem:[%s4 + $0x10] sm:$0xff]
    %v40 = vld [vmem:[%s4 + $0x18] sm:$0xff]
    %v41 = vld [vmem:[%s4 + $0x20] sm:$0xff]
    %v42 = vld [vmem:[%s4 + $0x28] sm:$0xff]
    %v43 = vld [vmem:[%s4 + $0x30] sm:$0xff]
    %v44 = vld [vmem:[%s4 + $0x38] sm:$0xff]
    %v45 = vld [vmem:[%s4 + $0x40] sm:$0xff]
    %v46 = vld [vmem:[%s4 + $0x48] sm:$0xff]
    %v47 = vld [vmem:[%s4 + $0x50] sm:$0xff]
    %v48 = vld [vmem:[%s4 + $0x58] sm:$0xff]
    %v49 = vld [vmem:[%s4 + $0x60] sm:$0xff]
    %v50 = vld [vmem:[%s4 + $0x68] sm:$0xff]
    %v51 = vld [vmem:[%s4 + $0x70] sm:$0xff]
    %v52 = vld [vmem:[%s4 + $0x78] sm:$0xff]
    %v53 = vld [vmem:[%s4 + $0x80] sm:$0x1]
    %v54 = vld [vmem:[%s4 + $0x88] sm:$0xff]
    %v55 = vld [vmem:[%s4 + $0x90] sm:$0xff]
    %v56 = vld [vmem:[%s4 + $0x98] sm:$0xff]
    %v57 = vld [vmem:[%s4 + $0xa0] sm:$0xff]
    %v58 = vld [vmem:[%s4 + $0xa8] sm:$0xff]
    %v59 = vld [vmem:[%s4 + $0xb0] sm:$0xff]
    %v60 = vld [vmem:[%s4 + $0xb8] sm:$0xff]
    %v61 = vld [vmem:[%s4 + $0xc0] sm:$0xff]
    %v62 = vld [vmem:[%s1] sm:$0xff]
    %v63 = vld [vmem:[%s1 + $0x8] sm:$0xff]
    %v64 = vld [vmem:[%s1 + $0x10] sm:$0xff]
    %v65 = vld [vmem:[%s1 + $0x18] sm:$0xff]
    %67 = vset.pattern.permute.xlu0 0
    %68 = vperm.xlu0 %67, %v37
    %v69 = vpop.permute.xlu0 %68
    %72 = vset.pattern.permute.xlu0 0
    %73 = vperm.xlu0 %72, %v38
    %v74 = vpop.permute.xlu0 %73
    %77 = vset.pattern.permute.xlu0 0
    %78 = vperm.xlu0 %77, %v39
    %v79 = vpop.permute.xlu0 %78
    %82 = vset.pattern.permute.xlu0 0
    %83 = vperm.xlu0 %82, %v40
    %v84 = vpop.permute.xlu0 %83
    %vm86 = vcmask 130048
    %v88 = vsel %vm86, %v62, 0
    %v91 = vsel %vm86, %v63, 0
    %v94 = vsel %vm86, %v64, 0
    %v97 = vsel %vm86, %v65, 0
    %v100 = vsel %vm86, %v21, 0
    %v103 = vsel %vm86, %v22, 0
    %v106 = vsel %vm86, %v23, 0
    %v109 = vsel %vm86, %v24, 0
    %v112 = vsel %vm86, %v25, 0
    %v115 = vsel %vm86, %v26, 0
    %v118 = vsel %vm86, %v27, 0
    %v121 = vsel %vm86, %v28, 0
    %v124 = vsel %vm86, %v29, 0
    %v127 = vsel %vm86, %v30, 0
    %v130 = vsel %vm86, %v31, 0
    %v133 = vsel %vm86, %v32, 0
    %v136 = vsel %vm86, %v33, 0
    %v139 = vsel %vm86, %v34, 0
    %v142 = vsel %vm86, %v35, 0
    %v145 = vsel %vm86, %v36, 0
    %147 = vmatprep.subr.mxu0 0.0
    %148 = vmatpush1.xpose.msra.mxu0 %v145
    %149 = vmatprep.subr.mxu0 0.0
    %150 = vmatpush1.xpose.msra.mxu0 %v142
    %151 = vmatprep.subr.mxu0 0.0
    %152 = vmatpush1.xpose.msra.mxu0 %v139
    %153 = vmatprep.subr.mxu0 0.0
    %154 = vmatpush1.xpose.msra.mxu0 %v136
    %155 = vmatprep.subr.mxu0 0.0
    %156 = vmatpush1.xpose.msra.mxu0 %v133
    %157 = vmatprep.subr.mxu0 0.0
    %158 = vmatpush1.xpose.msra.mxu0 %v130
    %159 = vmatprep.subr.mxu0 0.0
    %160 = vmatpush1.xpose.msra.mxu0 %v127
    %161 = vmatprep.subr.mxu0 0.0
    %162 = vmatpush1.xpose.msra.mxu0 %v124
    %163 = vmatprep.subr.mxu0 0.0
    %164 = vmatpush1.xpose.msra.mxu0 %v121
    %165 = vmatprep.subr.mxu0 0.0
    %166 = vmatpush1.xpose.msra.mxu0 %v118
    %167 = vmatprep.subr.mxu0 0.0
    %168 = vmatpush1.xpose.msra.mxu0 %v115
    %169 = vmatprep.subr.mxu0 0.0
    %170 = vmatpush1.xpose.msra.mxu0 %v112
    %171 = vmatprep.subr.mxu0 0.0
    %172 = vmatpush1.xpose.msra.mxu0 %v109
    %173 = vmatprep.subr.mxu0 0.0
    %174 = vmatpush1.xpose.msra.mxu0 %v106
    %175 = vmatprep.subr.mxu0 0.0
    %176 = vmatpush1.xpose.msra.mxu0 %v103
    %177 = vmatprep.subr.mxu0 0.0
    %178 = vmatpush1.xpose.msra.mxu0 %v100
    %179 = vmatprep.subr.mxu0 0.0
    %180 = vmatpush2.xpose.msra.mxu0 0.0
    %181 = vmatprep.subr.mxu0 0.0
    %182 = vmatpush2.xpose.msra.mxu0 0.0
    %183 = vmatprep.subr.mxu0 0.0
    %184 = vmatpush2.xpose.msra.mxu0 0.0
    %185 = vmatprep.subr.mxu0 0.0
    %186 = vmatpush2.xpose.msra.mxu0 0.0
    %187 = vmatprep.subr.mxu0 0.0
    %188 = vmatpush2.xpose.msra.mxu0 0.0
    %189 = vmatprep.subr.mxu0 0.0
    %190 = vmatpush2.xpose.msra.mxu0 0.0
    %191 = vmatprep.subr.mxu0 0.0
    %192 = vmatpush2.xpose.msra.mxu0 0.0
    %193 = vmatprep.subr.mxu0 0.0
    %194 = vmatpush2.xpose.msra.mxu0 0.0
    %195 = vmatprep.subr.mxu0 0.0
    %196 = vmatpush2.xpose.msra.mxu0 0.0
    %197 = vmatprep.subr.mxu0 0.0
    %198 = vmatpush2.xpose.msra.mxu0 0.0
    %199 = vmatprep.subr.mxu0 0.0
    %200 = vmatpush2.xpose.msra.mxu0 0.0
    %201 = vmatprep.subr.mxu0 0.0
    %202 = vmatpush2.xpose.msra.mxu0 0.0
    %203 = vmatprep.subr.mxu0 0.0
    %204 = vmatpush2.xpose.msra.mxu0 0.0
    %205 = vmatprep.subr.mxu0 0.0
    %206 = vmatpush2.xpose.msra.mxu0 0.0
    %207 = vmatprep.subr.mxu0 0.0
    %208 = vmatpush2.xpose.msra.mxu0 0.0
    %209 = vmatprep.subr.mxu0 0.0
    %210 = vmatpush2.xpose.msra.mxu0 0.0
    %211 = vmatprep.mubr.f32.mxu0 0.0
    %212 = vmatmul.mubr.f32.gmra.mxu0 %v88
    %v213 = vpop.f32.mrf.mxu0
    %v214 = vadd.f32 %v69, %v213
    %v215 = vpop.f32.mrf.mxu0
    %216 = vmatprep.mubr.f32.mxu0 0.0
    %217 = vmatmul.mubr.f32.gmra.mxu0 %v91
    %v218 = vpop.f32.mrf.mxu0
    %v219 = vadd.f32 %v74, %v218
    %v220 = vpop.f32.mrf.mxu0
    %221 = vmatprep.mubr.f32.mxu0 0.0
    %222 = vmatmul.mubr.f32.gmra.mxu0 %v94
    %v223 = vpop.f32.mrf.mxu0
    %v224 = vadd.f32 %v79, %v223
    %v225 = vpop.f32.mrf.mxu0
    %226 = vmatprep.mubr.f32.mxu0 0.0
    %227 = vmatmul.mubr.f32.gmra.mxu0 %v97
    %v228 = vpop.f32.mrf.mxu0
    %v229 = vadd.f32 %v84, %v228
    %v230 = vpop.f32.mrf.mxu0
    %231 = vdwg.mxu0
    %v232 = vmax.f32 %v214, 0.0
    %v233 = vmax.f32 %v219, 0.0
    %v234 = vmax.f32 %v224, 0.0
    %v235 = vmax.f32 %v229, 0.0
    %v236 = vld [vmem:[%s2] sm:$0xff]
    %v237 = vld [vmem:[%s2 + $0x8] sm:$0xff]
    %v238 = vld [vmem:[%s2 + $0x10] sm:$0xff]
    %v239 = vld [vmem:[%s2 + $0x18] sm:$0xff]
    %241 = vset.pattern.permute.xlu0 0
    %242 = vperm.xlu0 %241, %v41
    %v243 = vpop.permute.xlu0 %242
    %246 = vset.pattern.permute.xlu0 0
    %247 = vperm.xlu0 %246, %v42
    %v248 = vpop.permute.xlu0 %247
    %251 = vset.pattern.permute.xlu0 0
    %252 = vperm.xlu0 %251, %v43
    %v253 = vpop.permute.xlu0 %252
    %256 = vset.pattern.permute.xlu0 0
    %257 = vperm.xlu0 %256, %v44
    %v258 = vpop.permute.xlu0 %257
    %vm260 = vcmask 261120
    %v262 = vsel %vm260, %v236, 0
    %v265 = vsel %vm260, %v237, 0
    %v268 = vsel %vm260, %v238, 0
    %v271 = vsel %vm260, %v239, 0
    %273 = vmatprep.subr.mxu0 0.0
    %274 = vmatpush1.msra.mxu0 0.0
    %275 = vmatprep.subr.mxu0 0.0
    %276 = vmatpush1.msra.mxu0 0.0
    %277 = vmatprep.subr.mxu0 0.0
    %278 = vmatpush1.msra.mxu0 0.0
    %279 = vmatprep.subr.mxu0 0.0
    %280 = vmatpush1.msra.mxu0 0.0
    %281 = vmatprep.subr.mxu0 0.0
    %282 = vmatpush1.msra.mxu0 0.0
    %283 = vmatprep.subr.mxu0 0.0
    %284 = vmatpush1.msra.mxu0 0.0
    %285 = vmatprep.subr.mxu0 0.0
    %286 = vmatpush1.msra.mxu0 0.0
    %287 = vmatprep.subr.mxu0 0.0
    %288 = vmatpush1.msra.mxu0 0.0
    %289 = vmatprep.subr.mxu0 0.0
    %290 = vmatpush1.msra.mxu0 0.0
    %291 = vmatprep.subr.mxu0 0.0
    %292 = vmatpush1.msra.mxu0 0.0
    %293 = vmatprep.subr.mxu0 0.0
    %294 = vmatpush1.msra.mxu0 0.0
    %295 = vmatprep.subr.mxu0 0.0
    %296 = vmatpush1.msra.mxu0 0.0
    %297 = vmatprep.subr.mxu0 0.0
    %298 = vmatpush1.msra.mxu0 %v235
    %299 = vmatprep.subr.mxu0 0.0
    %300 = vmatpush1.msra.mxu0 %v234
    %301 = vmatprep.subr.mxu0 0.0
    %302 = vmatpush1.msra.mxu0 %v233
    %303 = vmatprep.subr.mxu0 0.0
    %304 = vmatpush1.msra.mxu0 %v232
    %305 = vmatprep.subr.mxu0 0.0
    %306 = vmatpush2.msra.mxu0 0.0
    %307 = vmatprep.subr.mxu0 0.0
    %308 = vmatpush2.msra.mxu0 0.0
    %309 = vmatprep.subr.mxu0 0.0
    %310 = vmatpush2.msra.mxu0 0.0
    %311 = vmatprep.subr.mxu0 0.0
    %312 = vmatpush2.msra.mxu0 0.0
    %313 = vmatprep.subr.mxu0 0.0
    %314 = vmatpush2.msra.mxu0 0.0
    %315 = vmatprep.subr.mxu0 0.0
    %316 = vmatpush2.msra.mxu0 0.0
    %317 = vmatprep.subr.mxu0 0.0
    %318 = vmatpush2.msra.mxu0 0.0
    %319 = vmatprep.subr.mxu0 0.0
    %320 = vmatpush2.msra.mxu0 0.0
    %321 = vmatprep.subr.mxu0 0.0
    %322 = vmatpush2.msra.mxu0 0.0
    %323 = vmatprep.subr.mxu0 0.0
    %324 = vmatpush2.msra.mxu0 0.0
    %325 = vmatprep.subr.mxu0 0.0
    %326 = vmatpush2.msra.mxu0 0.0
    %327 = vmatprep.subr.mxu0 0.0
    %328 = vmatpush2.msra.mxu0 0.0
    %329 = vmatprep.subr.mxu0 0.0
    %330 = vmatpush2.msra.mxu0 0.0
    %331 = vmatprep.subr.mxu0 0.0
    %332 = vmatpush2.msra.mxu0 0.0
    %333 = vmatprep.subr.mxu0 0.0
    %334 = vmatpush2.msra.mxu0 0.0
    %335 = vmatprep.subr.mxu0 0.0
    %336 = vmatpush2.msra.mxu0 0.0
    %337 = vmatprep.mubr.f32.mxu0 0.0
    %338 = vmatmul.mubr.f32.gmra.mxu0 %v262
    %v339 = vpop.f32.mrf.mxu0
    %v340 = vadd.f32 %v243, %v339
    %v341 = vpop.f32.mrf.mxu0
    %342 = vmatprep.mubr.f32.mxu0 0.0
    %343 = vmatmul.mubr.f32.gmra.mxu0 %v265
    %v344 = vpop.f32.mrf.mxu0
    %v345 = vadd.f32 %v248, %v344
    %v346 = vpop.f32.mrf.mxu0
    %347 = vmatprep.mubr.f32.mxu0 0.0
    %348 = vmatmul.mubr.f32.gmra.mxu0 %v268
    %v349 = vpop.f32.mrf.mxu0
    %v350 = vadd.f32 %v253, %v349
    %v351 = vpop.f32.mrf.mxu0
    %352 = vmatprep.mubr.f32.mxu0 0.0
    %353 = vmatmul.mubr.f32.gmra.mxu0 %v271
    %v354 = vpop.f32.mrf.mxu0
    %v355 = vadd.f32 %v258, %v354
    %v356 = vpop.f32.mrf.mxu0
    %357 = vdwg.mxu0
    %v358 = vmax.f32 %v340, 0.0
    %v359 = vmax.f32 %v345, 0.0
    %v360 = vmax.f32 %v350, 0.0
    %v361 = vmax.f32 %v355, 0.0
    %v362 = vld [vmem:[%s3] sm:$0xff]
    %v363 = vld [vmem:[%s3 + $0x8] sm:$0xff]
    %v364 = vld [vmem:[%s3 + $0x10] sm:$0xff]
    %v365 = vld [vmem:[%s3 + $0x18] sm:$0xff]
    %v366 = vld [vmem:[%s3 + $0x20] sm:$0xff]
    %v367 = vld [vmem:[%s3 + $0x28] sm:$0xff]
    %v368 = vld [vmem:[%s3 + $0x30] sm:$0xff]
    %v369 = vld [vmem:[%s3 + $0x38] sm:$0xff]
    %371 = vset.pattern.permute.xlu0 0
    %372 = vperm.xlu0 %371, %v45
    %v373 = vpop.permute.xlu0 %372
    %376 = vset.pattern.permute.xlu0 0
    %377 = vperm.xlu0 %376, %v46
    %v378 = vpop.permute.xlu0 %377
    %381 = vset.pattern.permute.xlu0 0
    %382 = vperm.xlu0 %381, %v47
    %v383 = vpop.permute.xlu0 %382
    %386 = vset.pattern.permute.xlu0 0
    %387 = vperm.xlu0 %386, %v48
    %v388 = vpop.permute.xlu0 %387
    %391 = vset.pattern.permute.xlu0 0
    %392 = vperm.xlu0 %391, %v49
    %v393 = vpop.permute.xlu0 %392
    %396 = vset.pattern.permute.xlu0 0
    %397 = vperm.xlu0 %396, %v50
    %v398 = vpop.permute.xlu0 %397
    %401 = vset.pattern.permute.xlu0 0
    %402 = vperm.xlu0 %401, %v51
    %v403 = vpop.permute.xlu0 %402
    %406 = vset.pattern.permute.xlu0 0
    %407 = vperm.xlu0 %406, %v52
    %v408 = vpop.permute.xlu0 %407
    %v411 = vsel %vm260, %v362, 0
    %v414 = vsel %vm260, %v363, 0
    %v417 = vsel %vm260, %v364, 0
    %v420 = vsel %vm260, %v365, 0
    %v423 = vsel %vm260, %v366, 0
    %v426 = vsel %vm260, %v367, 0
    %v429 = vsel %vm260, %v368, 0
    %v432 = vsel %vm260, %v369, 0
    %434 = vmatprep.subr.mxu0 0.0
    %435 = vmatpush1.msra.mxu0 0.0
    %436 = vmatprep.subr.mxu0 0.0
    %437 = vmatpush1.msra.mxu0 0.0
    %438 = vmatprep.subr.mxu0 0.0
    %439 = vmatpush1.msra.mxu0 0.0
    %440 = vmatprep.subr.mxu0 0.0
    %441 = vmatpush1.msra.mxu0 0.0
    %442 = vmatprep.subr.mxu0 0.0
    %443 = vmatpush1.msra.mxu0 0.0
    %444 = vmatprep.subr.mxu0 0.0
    %445 = vmatpush1.msra.mxu0 0.0
    %446 = vmatprep.subr.mxu0 0.0
    %447 = vmatpush1.msra.mxu0 0.0
    %448 = vmatprep.subr.mxu0 0.0
    %449 = vmatpush1.msra.mxu0 0.0
    %450 = vmatprep.subr.mxu0 0.0
    %451 = vmatpush1.msra.mxu0 0.0
    %452 = vmatprep.subr.mxu0 0.0
    %453 = vmatpush1.msra.mxu0 0.0
    %454 = vmatprep.subr.mxu0 0.0
    %455 = vmatpush1.msra.mxu0 0.0
    %456 = vmatprep.subr.mxu0 0.0
    %457 = vmatpush1.msra.mxu0 0.0
    %458 = vmatprep.subr.mxu0 0.0
    %459 = vmatpush1.msra.mxu0 %v361
    %460 = vmatprep.subr.mxu0 0.0
    %461 = vmatpush1.msra.mxu0 %v360
    %462 = vmatprep.subr.mxu0 0.0
    %463 = vmatpush1.msra.mxu0 %v359
    %464 = vmatprep.subr.mxu0 0.0
    %465 = vmatpush1.msra.mxu0 %v358
    %466 = vmatprep.subr.mxu0 0.0
    %467 = vmatpush2.msra.mxu0 0.0
    %468 = vmatprep.subr.mxu0 0.0
    %469 = vmatpush2.msra.mxu0 0.0
    %470 = vmatprep.subr.mxu0 0.0
    %471 = vmatpush2.msra.mxu0 0.0
    %472 = vmatprep.subr.mxu0 0.0
    %473 = vmatpush2.msra.mxu0 0.0
    %474 = vmatprep.subr.mxu0 0.0
    %475 = vmatpush2.msra.mxu0 0.0
    %476 = vmatprep.subr.mxu0 0.0
    %477 = vmatpush2.msra.mxu0 0.0
    %478 = vmatprep.subr.mxu0 0.0
    %479 = vmatpush2.msra.mxu0 0.0
    %480 = vmatprep.subr.mxu0 0.0
    %481 = vmatpush2.msra.mxu0 0.0
    %482 = vmatprep.subr.mxu0 0.0
    %483 = vmatpush2.msra.mxu0 0.0
    %484 = vmatprep.subr.mxu0 0.0
    %485 = vmatpush2.msra.mxu0 0.0
    %486 = vmatprep.subr.mxu0 0.0
    %487 = vmatpush2.msra.mxu0 0.0
    %488 = vmatprep.subr.mxu0 0.0
    %489 = vmatpush2.msra.mxu0 0.0
    %490 = vmatprep.subr.mxu0 0.0
    %491 = vmatpush2.msra.mxu0 0.0
    %492 = vmatprep.subr.mxu0 0.0
    %493 = vmatpush2.msra.mxu0 0.0
    %494 = vmatprep.subr.mxu0 0.0
    %495 = vmatpush2.msra.mxu0 0.0
    %496 = vmatprep.subr.mxu0 0.0
    %497 = vmatpush2.msra.mxu0 0.0
    %498 = vmatprep.mubr.f32.mxu0 0.0
    %499 = vmatmul.mubr.f32.gmra.mxu0 %v411
    %v500 = vpop.f32.mrf.mxu0
    %v501 = vadd.f32 %v373, %v500
    %v502 = vpop.f32.mrf.mxu0
    %503 = vmatprep.mubr.f32.mxu0 0.0
    %504 = vmatmul.mubr.f32.gmra.mxu0 %v414
    %v505 = vpop.f32.mrf.mxu0
    %v506 = vadd.f32 %v378, %v505
    %v507 = vpop.f32.mrf.mxu0
    %508 = vmatprep.mubr.f32.mxu0 0.0
    %509 = vmatmul.mubr.f32.gmra.mxu0 %v417
    %v510 = vpop.f32.mrf.mxu0
    %v511 = vadd.f32 %v383, %v510
    %v512 = vpop.f32.mrf.mxu0
    %513 = vmatprep.mubr.f32.mxu0 0.0
    %514 = vmatmul.mubr.f32.gmra.mxu0 %v420
    %v515 = vpop.f32.mrf.mxu0
    %v516 = vadd.f32 %v388, %v515
    %v517 = vpop.f32.mrf.mxu0
    %518 = vmatprep.mubr.f32.mxu0 0.0
    %519 = vmatmul.mubr.f32.gmra.mxu0 %v423
    %v520 = vpop.f32.mrf.mxu0
    %v521 = vadd.f32 %v393, %v520
    %v522 = vpop.f32.mrf.mxu0
    %523 = vmatprep.mubr.f32.mxu0 0.0
    %524 = vmatmul.mubr.f32.gmra.mxu0 %v426
    %v525 = vpop.f32.mrf.mxu0
    %v526 = vadd.f32 %v398, %v525
    %v527 = vpop.f32.mrf.mxu0
    %528 = vmatprep.mubr.f32.mxu0 0.0
    %529 = vmatmul.mubr.f32.gmra.mxu0 %v429
    %v530 = vpop.f32.mrf.mxu0
    %v531 = vadd.f32 %v403, %v530
    %v532 = vpop.f32.mrf.mxu0
    %533 = vmatprep.mubr.f32.mxu0 0.0
    %534 = vmatmul.mubr.f32.gmra.mxu0 %v432
    %v535 = vpop.f32.mrf.mxu0
    %v536 = vadd.f32 %v408, %v535
    %v537 = vpop.f32.mrf.mxu0
    %538 = vdwg.mxu0
    %v539 = vmax.f32 %v501, 0.0
    %v540 = vmax.f32 %v506, 0.0
    %v541 = vmax.f32 %v511, 0.0
    %v542 = vmax.f32 %v516, 0.0
    %v543 = vmax.f32 %v521, 0.0
    %v544 = vmax.f32 %v526, 0.0
    %v545 = vmax.f32 %v531, 0.0
    %v546 = vmax.f32 %v536, 0.0
    %548 = vset.pattern.permute.xlu0 0
    %549 = vperm.xlu0 %548, %v54
    %v550 = vpop.permute.xlu0 %549
    %553 = vset.pattern.permute.xlu0 0
    %554 = vperm.xlu0 %553, %v55
    %v555 = vpop.permute.xlu0 %554
    %558 = vset.pattern.permute.xlu0 0
    %559 = vperm.xlu0 %558, %v56
    %v560 = vpop.permute.xlu0 %559
    %563 = vset.pattern.permute.xlu0 0
    %564 = vperm.xlu0 %563, %v57
    %v565 = vpop.permute.xlu0 %564
    %568 = vset.pattern.permute.xlu0 0
    %569 = vperm.xlu0 %568, %v58
    %v570 = vpop.permute.xlu0 %569
    %573 = vset.pattern.permute.xlu0 0
    %574 = vperm.xlu0 %573, %v59
    %v575 = vpop.permute.xlu0 %574
    %578 = vset.pattern.permute.xlu0 0
    %579 = vperm.xlu0 %578, %v60
    %v580 = vpop.permute.xlu0 %579
    %583 = vset.pattern.permute.xlu0 0
    %584 = vperm.xlu0 %583, %v61
    %v585 = vpop.permute.xlu0 %584
    %v587 = vmul.f32 %v539, %v550
    %v588 = vmul.f32 %v540, %v555
    %v589 = vmul.f32 %v541, %v560
    %v590 = vmul.f32 %v542, %v565
    %v591 = vmul.f32 %v543, %v570
    %v592 = vmul.f32 %v544, %v575
    %v593 = vmul.f32 %v545, %v580
    %v594 = vmul.f32 %v546, %v585
    %v595 = vadd.f32 %v587, %v588
    %v596 = vadd.f32 %v595, %v589
    %v597 = vadd.f32 %v596, %v590
    %v598 = vadd.f32 %v597, %v591
    %v599 = vadd.f32 %v598, %v592
    %v600 = vadd.f32 %v599, %v593
    %v601 = vadd.f32 %v600, %v594
    %v602 = vrot.slane %v601, 4
    %v603 = vadd.f32 %v601, %v602
    %v604 = vrot.slane %v603, 2
    %v605 = vadd.f32 %v603, %v604
    %v606 = vrot.slane %v605, 1
    %v607 = vadd.f32 %v605, %v606
    %609 = vset.pattern.permute.xlu0 0
    %610 = vperm.xlu0 %609, %v53
    %v611 = vpop.permute.xlu0 %610
    %v613 = vadd.f32 %v607, %v611
    %614 = vst [vmem:[#allocation2] sm:$0x1] %v613
    // Predicated region
    $region22: #{tpu_custom_call.1} parent=1 // pred_check
      _
    $region23: #{tpu_custom_call.1} parent=1 // pred_check_branch
      %616 = sbr.rel (0) target = $region25
    $region24: #{tpu_custom_call.1} parent=1 // pred_region
      %s618 = ssub.s32 16, 16
      %619 = vsyncadd [#allocation3], %s618
      %s621 = sshll.u32 [#allocation2], 4
      %s622 = int_to_ptr.vmem [resolvable:$true] %s621
      %624 = dma.vmem_to_hbm [thread:$0]  %s622, 16, %s5, [#allocation3]
    $region25: #{tpu_custom_call.1} parent=1 // pred_fallthru
      _
    // Predicated region
    $region26: #{tpu_custom_call.1} parent=1 // pred_check
      _
    $region27: #{tpu_custom_call.1} parent=1 // pred_check_branch
      %626 = sbr.rel (0) target = $region29
    $region28: #{tpu_custom_call.1} parent=1 // pred_region
      %627 = dma.done [#allocation3], 16
    $region29: #{tpu_custom_call.1} parent=1 // pred_fallthru
      _
    %628 = vsyncpa [#allocation3], 1

</llo_original>
